<compile_context>
chip_gen: v5e
topology: v5e:2x2
jax: 0.10.0
libtpu: 0.0.40
codegen_flags: <defaults>
</compile_context>

<pallas_src>
import functools
import math

import jax
import jax.numpy as jnp
from jax import lax
from jax.experimental import pallas as pl
from jax.experimental.pallas import tpu as pltpu

EPS = 1e-5
LANES = 128
SUBLANES = 8


def _round_up(a, b):
    return (a + b - 1) // b * b


# ----------------------------- shared in-kernel helpers -----------------------------

def _tap_masks(rows, cols, k, col0, n_valid, need_valid):
    """Per-sequence / pad masks, built once at full operand height and reused."""
    pos = lax.broadcasted_iota(jnp.int32, (rows, cols), 1)
    l = pos % k                            # position inside its length-k sequence
    m_left = l >= 1                        # tap d=-1 stays inside the sequence
    m_right = l <= (k - 2)                 # tap d=+1 stays inside the sequence
    if need_valid:
        valid = pos < (n_valid - col0)     # real (non-pad) columns of this tile
        m_left = jnp.logical_and(m_left, valid)
        m_right = jnp.logical_and(m_right, valid)
    else:
        valid = None
    return valid, m_left, m_right


def _taps(h, m_left, m_right, valid):
    """(C, T) -> (3C, T) tap stack [h[:,r-1]; h[:,r]; h[:,r+1]] with per-sequence zero padding.
    `valid` is None when h is already exactly zero on pad columns (no redundant select).
    3C is a multiple of 8 (C padded to C_out in the wrapper) -> sublane-aligned concat."""
    cols = h.shape[1]
    h0 = h if valid is None else jnp.where(valid, h, 0.0)
    hl = jnp.where(m_left, pltpu.roll(h, 1, axis=1), 0.0)            # h[:, r-1]  (XLU)
    hr = jnp.where(m_right, pltpu.roll(h, cols - 1, axis=1), 0.0)    # h[:, r+1]  (XLU)
    return jnp.concatenate([hl, h0, hr], axis=0)


# ----------------------------- whole-slab kernel (slab fits VMEM) -----------------------------

def _fused_kernel(x_ref, p_ref, o_ref, *, k, n_valid, c_out):
    cols = x_ref.shape[1]
    need_valid = cols > n_valid                    # static: drop pad masks when lane-aligned
    inv_n = jnp.float32(1.0 / n_valid)

    valid, m_left, m_right = _tap_masks(c_out, cols, k, 0, n_valid, need_valid)

    x = x_ref[...]                                 # (C_out, NLp); pad rows/cols are zero
    w1 = p_ref[0:c_out, :]
    w2 = p_ref[c_out:2 * c_out, :]
    wsc = p_ref[2 * c_out:3 * c_out, 0:c_out]
    g1 = p_ref[3 * c_out:4 * c_out, 0:1]
    be1 = p_ref[3 * c_out:4 * c_out, 1:2]
    g2 = p_ref[3 * c_out:4 * c_out, 2:3]
    be2 = p_ref[3 * c_out:4 * c_out, 3:4]

    def batchnorm(h, gamma, beta):
        # training-mode BN over the n_valid real columns; h is exactly zero on pad columns
        mean = jnp.sum(h, axis=1, keepdims=True) * inv_n
        cen = h - mean
        if need_valid:
            cen = jnp.where(valid, cen, 0.0)       # two-pass variance, pads excluded
        var = jnp.sum(cen * cen, axis=1, keepdims=True) * inv_n
        a = gamma * lax.rsqrt(var + EPS)           # rsqrt on EUP
        b = beta - mean * a
        return h * a + b                           # single FMA over the slab

    # conv1 (3 taps fused into one MXU matmul) -> BN1 -> relu
    h = jnp.dot(w1, _taps(x, m_left, m_right, None), preferred_element_type=jnp.float32)
    h = jnp.maximum(batchnorm(h, g1, be1), 0.0)
    # conv2 -> BN2
    h = jnp.dot(w2, _taps(h, m_left, m_right, valid), preferred_element_type=jnp.float32)
    h = batchnorm(h, g2, be2)
    # shortcut: 1x1 conv on the pooled input == channel matmul
    h = h + jnp.dot(wsc, x, preferred_element_type=jnp.float32)
    o_ref[...] = jnp.maximum(h, 0.0).astype(o_ref.dtype)   # lane-dense, unmasked store


# ----------------------------- lane-tiled 3-phase kernels (large slabs) -----------------------------
# Two-pass BN across tiles: phases A/B accumulate per-channel sum/sumsq over an "arbitrary" tile
# axis (resident (C_out,1) accumulator outputs); phase C applies the affines.  Intermediates are
# recomputed from x rather than parked in HBM (4 slab passes of HBM traffic instead of 7).

def _stats1_kernel(x_ref, p_ref, s_ref, q_ref, *, k, n_valid, c_out, need_valid):
    t = pl.program_id(0)
    cols = x_ref.shape[1]

    @pl.when(t == 0)
    def _():
        s_ref[...] = jnp.zeros_like(s_ref)
        q_ref[...] = jnp.zeros_like(q_ref)

    _, m_left, m_right = _tap_masks(c_out, cols, k, t * cols, n_valid, need_valid)
    x = x_ref[...]
    w1 = p_ref[0:c_out, :]
    h1 = jnp.dot(w1, _taps(x, m_left, m_right, None), preferred_element_type=jnp.float32)
    s_ref[...] += jnp.sum(h1, axis=1, keepdims=True)
    q_ref[...] += jnp.sum(h1 * h1, axis=1, keepdims=True)


def _stats2_kernel(x_ref, p_ref, aff_ref, s_ref, q_ref, *, k, n_valid, c_out, need_valid):
    t = pl.program_id(0)
    cols = x_ref.shape[1]

    @pl.when(t == 0)
    def _():
        s_ref[...] = jnp.zeros_like(s_ref)
        q_ref[...] = jnp.zeros_like(q_ref)

    valid, m_left, m_right = _tap_masks(c_out, cols, k, t * cols, n_valid, need_valid)
    x = x_ref[...]
    w1 = p_ref[0:c_out, :]
    w2 = p_ref[c_out:2 * c_out, :]
    a1 = aff_ref[:, 0:1]
    b1 = aff_ref[:, 1:2]

    h1 = jnp.dot(w1, _taps(x, m_left, m_right, None), preferred_element_type=jnp.float32)
    h = jnp.maximum(h1 * a1 + b1, 0.0)
    h2 = jnp.dot(w2, _taps(h, m_left, m_right, valid), preferred_element_type=jnp.float32)
    s_ref[...] += jnp.sum(h2, axis=1, keepdims=True)
    q_ref[...] += jnp.sum(h2 * h2, axis=1, keepdims=True)


def _final_kernel(x_ref, p_ref, aff_ref, o_ref, *, k, n_valid, c_out, need_valid):
    t = pl.program_id(0)
    cols = x_ref.shape[1]
    valid, m_left, m_right = _tap_masks(c_out, cols, k, t * cols, n_valid, need_valid)
    x = x_ref[...]
    w1 = p_ref[0:c_out, :]
    w2 = p_ref[c_out:2 * c_out, :]
    wsc = p_ref[2 * c_out:3 * c_out, 0:c_out]
    a1 = aff_ref[:, 0:1]
    b1 = aff_ref[:, 1:2]
    a2 = aff_ref[:, 2:3]
    b2 = aff_ref[:, 3:4]

    h1 = jnp.dot(w1, _taps(x, m_left, m_right, None), preferred_element_type=jnp.float32)
    h = jnp.maximum(h1 * a1 + b1, 0.0)
    h2 = jnp.dot(w2, _taps(h, m_left, m_right, valid), preferred_element_type=jnp.float32)
    out = h2 * a2 + b2 + jnp.dot(wsc, x, preferred_element_type=jnp.float32)
    o_ref[...] = jnp.maximum(out, 0.0).astype(o_ref.dtype)   # lane-dense, unmasked store


# ----------------------------- wrapper (JAX glue) -----------------------------

def kmax_pooling(x, k):
    """PyTorch: topk along dim=2, sort indices, gather (keeps top-k values in original order)."""
    _, idx = lax.top_k(x, k)
    idx = jnp.sort(idx, axis=-1)
    return jnp.take_along_axis(x, idx, axis=-1)


def _pack_params(params, c_in, c_out):
    """Pack the 7 tiny parameter arrays into one (4*C_out, 3*C_out) slab (1 DMA):
       rows [0,C)   conv1 weight, tap-major, C_in zero-padded to C_out
       rows [C,2C)  conv2 weight, tap-major
       rows [2C,3C) 1x1 shortcut weight (columns >= C_in zero)
       rows [3C,4C) columns [g1 | b1 | g2 | b2]."""
    w1, g1, b1, w2, g2, b2, ws = params
    three = 3 * c_out
    w1t = jnp.pad(jnp.transpose(w1, (0, 2, 1)), ((0, 0), (0, 0), (0, c_out - c_in)))
    w1s = w1t.reshape(c_out, three)
    w2s = jnp.transpose(w2, (0, 2, 1)).reshape(c_out, three)
    wss = jnp.pad(ws[:, :, 0], ((0, 0), (0, three - c_in)))
    bn = jnp.pad(jnp.stack([g1, b1, g2, b2], axis=1), ((0, 0), (0, three - 4)))
    return jnp.concatenate([w1s, w2s, wss, bn], axis=0).astype(jnp.float32)


def _vmem_capacity():
    try:
        return int(pltpu.get_tpu_info().vmem_capacity_bytes)
    except Exception:
        return 64 << 20                                   # conservative fallback (v7x-sized)


def _run_whole_slab(x2, p, *, k, n_valid, c_out, vmem_limit):
    nlp = x2.shape[1]
    vmem = pl.BlockSpec(memory_space=pltpu.MemorySpace.VMEM)
    flops = 2 * n_valid * c_out * 7 * c_out
    return pl.pallas_call(
        functools.partial(_fused_kernel, k=k, n_valid=n_valid, c_out=c_out),
        out_shape=jax.ShapeDtypeStruct((c_out, nlp), jnp.float32),
        in_specs=[vmem, vmem],
        out_specs=vmem,
        compiler_params=pltpu.CompilerParams(vmem_limit_bytes=int(vmem_limit)),
        cost_estimate=pl.CostEstimate(flops=int(flops), transcendentals=2 * c_out,
                                      bytes_accessed=int(4 * nlp * 2 * c_out + 4 * p.size)),
    )(x2, p)


def _run_tiled(x2, p, params, *, k, n_valid, c_out, tile_target, cap):
    _, g1, b1, _, g2, b2, _ = params
    # tile must be a multiple of both 128 (lanes) and k (so sequences never straddle a tile)
    base = k * LANES // math.gcd(k, LANES)
    tile = base * max(1, tile_target // base)
    # TODO(synk): pathological k (huge lcm with 128) would need per-sequence lane padding instead.
    nlp = _round_up(n_valid, tile)
    num_tiles = nlp // tile
    need_valid = nlp > n_valid
    x2p = jnp.pad(x2, ((0, 0), (0, nlp - n_valid)))
    inv_n = 1.0 / n_valid

    x_spec = pl.BlockSpec((c_out, tile), lambda t: (0, t))
    p_spec = pl.BlockSpec(p.shape, lambda t: (0, 0))
    acc_spec = pl.BlockSpec((c_out, 1), lambda t: (0, 0))     # resident accumulator block
    stat = jax.ShapeDtypeStruct((c_out, 1), jnp.float32)
    vlim = min(int(0.9 * cap), 64 << 20)
    arb = pltpu.CompilerParams(dimension_semantics=("arbitrary",), vmem_limit_bytes=vlim)

    # phase A: conv1 batch statistics
    s1, q1 = pl.pallas_call(
        functools.partial(_stats1_kernel, k=k, n_valid=n_valid, c_out=c_out,
                          need_valid=need_valid),
        grid=(num_tiles,),
        in_specs=[x_spec, p_spec],
        out_specs=(acc_spec, acc_spec),
        out_shape=(stat, stat),
        compiler_params=arb,
    )(x2p, p)
    mean1 = s1 * inv_n
    var1 = q1 * inv_n - mean1 * mean1
    a1 = g1[:, None] * lax.rsqrt(var1 + EPS)
    c1 = b1[:, None] - mean1 * a1
    aff1 = jnp.concatenate([a1, c1], axis=1)                  # (C_out, 2)

    # phase B: conv2 batch statistics (recomputes conv1 from x; cheaper than an HBM intermediate)
    s2, q2 = pl.pallas_call(
        functools.partial(_stats2_kernel, k=k, n_valid=n_valid, c_out=c_out,
                          need_valid=need_valid),
        grid=(num_tiles,),
        in_specs=[x_spec, p_spec, pl.BlockSpec((c_out, 2), lambda t: (0, 0))],
        out_specs=(acc_spec, acc_spec),
        out_shape=(stat, stat),
        compiler_params=arb,
    )(x2p, p, aff1)
    mean2 = s2 * inv_n
    var2 = q2 * inv_n - mean2 * mean2
    a2 = g2[:, None] * lax.rsqrt(var2 + EPS)
    c2 = b2[:, None] - mean2 * a2
    aff = jnp.concatenate([a1, c1, a2, c2], axis=1)           # (C_out, 4)

    # phase C: apply BN affines + shortcut + relu; pure map -> "parallel" (v7x megacore)
    flops = 2 * n_valid * c_out * 7 * c_out
    return pl.pallas_call(
        functools.partial(_final_kernel, k=k, n_valid=n_valid, c_out=c_out,
                          need_valid=need_valid),
        grid=(num_tiles,),
        in_specs=[x_spec, p_spec, pl.BlockSpec((c_out, 4), lambda t: (0, 0))],
        out_specs=pl.BlockSpec((c_out, tile), lambda t: (0, t)),
        out_shape=jax.ShapeDtypeStruct((c_out, nlp), jnp.float32),
        compiler_params=pltpu.CompilerParams(dimension_semantics=("parallel",),
                                             vmem_limit_bytes=vlim),
        cost_estimate=pl.CostEstimate(flops=int(flops), transcendentals=0,
                                      bytes_accessed=int(4 * nlp * 2 * c_out + 4 * p.size)),
    )(x2p, p, aff)


@functools.partial(jax.jit, static_argnames=("mode", "tile_target"))
def kmax_pool_block(x, params, *, mode="auto", tile_target=8192):
    """x: (N, C_in, L) float32, PyTorch NCL layout.  Returns (N, C_out, L//2)."""
    N, C_in, L = x.shape
    C_out = params[0].shape[0]
    assert C_out > C_in and C_out % SUBLANES == 0, "script targets the increasing (4->8) config"

    # k-max pooling (increasing=True branch) — stays in JAX glue (data-dependent topk/sort/gather)
    k = L // 2
    xk = kmax_pooling(x, k)                                   # (N, C_in, k)
    NL = N * k

    # channels on sublanes (zero-padded to C_out rows), flattened batch*length on lanes
    x2 = jnp.pad(jnp.transpose(xk, (1, 0, 2)).reshape(C_in, NL), ((0, C_out - C_in), (0, 0)))
    p = _pack_params(params, C_in, C_out)

    cap = _vmem_capacity()
    est = 4 * _round_up(NL, LANES) * 16 * C_out               # rough whole-slab resident bytes
    use_tiled = (mode == "tiled") or (mode == "auto" and est > int(0.7 * cap))

    if use_tiled:
        out2 = _run_tiled(x2, p, params, k=k, n_valid=NL, c_out=C_out,
                          tile_target=tile_target, cap=cap)
    else:
        nlp = _round_up(NL, LANES)
        x2p = jnp.pad(x2, ((0, 0), (0, nlp - NL)))
        vlim = min(int(0.9 * cap), max(64 << 20, est + (8 << 20)))
        out2 = _run_whole_slab(x2p, p, k=k, n_valid=NL, c_out=C_out, vmem_limit=vlim)

    # drop lane padding, back to PyTorch NCL
    return jnp.transpose(out2[:, :NL].reshape(C_out, N, k), (1, 0, 2))


# ----------------------------- pure-JAX reference -----------------------------

def _ref_forward(x, params):
    w1, g1, b1, w2, g2, b2, ws = params
    xk = kmax_pooling(x, x.shape[2] // 2)

    def conv1d(h, w, pad):
        return lax.conv_general_dilated(h, w, (1,), [(pad, pad)],
                                        dimension_numbers=("NCH", "OIH", "NCH"))

    def bn(h, g, b):
        m = jnp.mean(h, axis=(0, 2), keepdims=True)
        v = jnp.mean((h - m) ** 2, axis=(0, 2), keepdims=True)
        return (h - m) * lax.rsqrt(v + EPS) * g[None, :, None] + b[None, :, None]

    h = jax.nn.relu(bn(conv1d(xk, w1, 1), g1, b1))
    h = bn(conv1d(h, w2, 1), g2, b2)
    h = h + conv1d(xk, ws, 0)
    return jax.nn.relu(h)


# ----------------------------- main -----------------------------

if __name__ == "__main__":
    key = jax.random.PRNGKey(0)
    kx, kp, kx2 = jax.random.split(key, 3)

    C_in, C_out = 4, 8
    k1, k2, k3, k4, k5, k6, k7 = jax.random.split(kp, 7)
    w1 = 0.2 * jax.random.normal(k1, (C_out, C_in, 3), jnp.float32)      # conv1.weight
    g1 = 1.0 + 0.1 * jax.random.normal(k2, (C_out,), jnp.float32)        # bn1.weight
    b1 = 0.1 * jax.random.normal(k3, (C_out,), jnp.float32)              # bn1.bias
    w2 = 0.2 * jax.random.normal(k4, (C_out, C_out, 3), jnp.float32)     # conv2.weight
    g2 = 1.0 + 0.1 * jax.random.normal(k5, (C_out,), jnp.float32)        # bn2.weight
    b2 = 0.1 * jax.random.normal(k6, (C_out,), jnp.float32)              # bn2.bias
    ws = 0.2 * jax.random.normal(k7, (C_out, C_in, 1), jnp.float32)      # shortcut 1x1 conv
    params = (w1, g1, b1, w2, g2, b2, ws)

    # 1) module-default small shapes -> single fused whole-slab kernel
    N, L = 2, 16
    x = jax.random.normal(kx, (N, C_in, L), jnp.float32)
    out = jax.block_until_ready(kmax_pool_block(x, params))
    ref = jax.block_until_ready(_ref_forward(x, params))
    assert out.shape == (N, C_out, L // 2), out.shape
    assert jnp.allclose(out, ref, atol=1e-4, rtol=1e-4), float(jnp.max(jnp.abs(out - ref)))

    # 2) larger input forced through the lane-tiled 3-phase grid path
    #    (N*k = 9472 -> 5 tiles of 2048 columns, last one partially padded)
    N2, L2 = 37, 512
    x_big = jax.random.normal(kx2, (N2, C_in, L2), jnp.float32)
    out_t = jax.block_until_ready(kmax_pool_block(x_big, params, mode="tiled", tile_target=2048))
    ref_t = jax.block_until_ready(_ref_forward(x_big, params))
    assert out_t.shape == (N2, C_out, L2 // 2), out_t.shape
    # tiled path uses a one-pass (sum/sumsq) cross-tile variance -> slightly looser tolerance
    assert jnp.allclose(out_t, ref_t, atol=5e-4, rtol=5e-4), float(jnp.max(jnp.abs(out_t - ref_t)))

    print("KERNEL_OK")
</pallas_src>

<mosaic_0001>
module attributes {stable_mosaic.version = 11 : i64} {
  func.func @_fused_kernel(%arg0: memref<8x128xf32, #tpu.memory_space<vmem>>, %arg1: memref<32x24xf32, #tpu.memory_space<vmem>>, %arg2: memref<8x128xf32, #tpu.memory_space<vmem>>) attributes {dimension_semantics = [], scalar_prefetch = 0 : i64, scratch_operands = 0 : i64, tpu.core_type = #tpu.core_type<tc>} {
    %0 = tpu.iota {dimensions = array<i32: 1>} : vector<8x128xi32>
    %c8_i32 = arith.constant 8 : i32
    %c0_i32 = arith.constant 0 : i32
    %1 = arith.cmpi eq, %c8_i32, %c0_i32 : i32
    %c1_i32 = arith.constant 1 : i32
    %2 = arith.select %1, %c1_i32, %c8_i32 : i32
    %3 = vector.broadcast %2 : i32 to vector<8x128xi32>
    %4 = arith.remsi %0, %3 : vector<8x128xi32>
    %c0_i32_0 = arith.constant 0 : i32
    %5 = vector.broadcast %c0_i32_0 : i32 to vector<8x128xi32>
    %6 = arith.cmpi ne, %4, %5 : vector<8x128xi32>
    %c0_i32_1 = arith.constant 0 : i32
    %7 = vector.broadcast %c0_i32_1 : i32 to vector<8x128xi32>
    %8 = arith.cmpi slt, %4, %7 : vector<8x128xi32>
    %c0_i32_2 = arith.constant 0 : i32
    %9 = arith.cmpi slt, %2, %c0_i32_2 : i32
    %10 = vector.broadcast %9 : i1 to vector<8x128xi1>
    %11 = vector.broadcast %10 : vector<8x128xi1> to vector<8x128xi1>
    %12 = arith.xori %8, %11 : vector<8x128xi1>
    %13 = arith.andi %12, %6 : vector<8x128xi1>
    %14 = vector.broadcast %2 : i32 to vector<8x128xi32>
    %15 = arith.addi %4, %14 : vector<8x128xi32>
    %16 = arith.select %13, %15, %4 : vector<8x128xi1>, vector<8x128xi32>
    %c1_i32_3 = arith.constant 1 : i32
    %17 = vector.broadcast %c1_i32_3 : i32 to vector<8x128xi32>
    %18 = arith.cmpi sge, %16, %17 : vector<8x128xi32>
    %c6_i32 = arith.constant 6 : i32
    %19 = vector.broadcast %c6_i32 : i32 to vector<8x128xi32>
    %20 = arith.cmpi sle, %16, %19 : vector<8x128xi32>
    %c16_i32 = arith.constant 16 : i32
    %21 = vector.broadcast %c16_i32 : i32 to vector<8x128xi32>
    %22 = arith.cmpi slt, %0, %21 : vector<8x128xi32>
    %23 = arith.andi %18, %22 : vector<8x128xi1>
    %24 = arith.andi %20, %22 : vector<8x128xi1>
    %c0 = arith.constant 0 : index
    %c0_4 = arith.constant 0 : index
    %25 = vector.load %arg0[%c0, %c0_4] : memref<8x128xf32, #tpu.memory_space<vmem>>, vector<8x128xf32>
    %c0_5 = arith.constant 0 : index
    %c0_6 = arith.constant 0 : index
    %26 = vector.load %arg1[%c0_5, %c0_6] : memref<32x24xf32, #tpu.memory_space<vmem>>, vector<8x24xf32>
    %c8 = arith.constant 8 : index
    %c0_7 = arith.constant 0 : index
    %27 = vector.load %arg1[%c8, %c0_7] : memref<32x24xf32, #tpu.memory_space<vmem>>, vector<8x24xf32>
    %c16 = arith.constant 16 : index
    %c0_8 = arith.constant 0 : index
    %28 = vector.load %arg1[%c16, %c0_8] : memref<32x24xf32, #tpu.memory_space<vmem>>, vector<8x8xf32>
    %c24 = arith.constant 24 : index
    %c0_9 = arith.constant 0 : index
    %29 = vector.load %arg1[%c24, %c0_9] : memref<32x24xf32, #tpu.memory_space<vmem>>, vector<8x1xf32>
    %c24_10 = arith.constant 24 : index
    %c1 = arith.constant 1 : index
    %30 = vector.load %arg1[%c24_10, %c1] : memref<32x24xf32, #tpu.memory_space<vmem>>, vector<8x1xf32>
    %c24_11 = arith.constant 24 : index
    %c2 = arith.constant 2 : index
    %31 = vector.load %arg1[%c24_11, %c2] : memref<32x24xf32, #tpu.memory_space<vmem>>, vector<8x1xf32>
    %c24_12 = arith.constant 24 : index
    %c3 = arith.constant 3 : index
    %32 = vector.load %arg1[%c24_12, %c3] : memref<32x24xf32, #tpu.memory_space<vmem>>, vector<8x1xf32>
    %c1_i32_13 = arith.constant 1 : i32
    %33 = tpu.dynamic_rotate %25 by %c1_i32_13 dim 1 : vector<8x128xf32>, i32 -> vector<8x128xf32>
    %cst = arith.constant 0.000000e+00 : f32
    %34 = vector.broadcast %cst : f32 to vector<8x128xf32>
    %35 = arith.select %23, %33, %34 : vector<8x128xi1>, vector<8x128xf32>
    %c127_i32 = arith.constant 127 : i32
    %36 = tpu.dynamic_rotate %25 by %c127_i32 dim 1 : vector<8x128xf32>, i32 -> vector<8x128xf32>
    %cst_14 = arith.constant 0.000000e+00 : f32
    %37 = vector.broadcast %cst_14 : f32 to vector<8x128xf32>
    %38 = arith.select %24, %36, %37 : vector<8x128xi1>, vector<8x128xf32>
    %39 = tpu.concatenate %35, %25, %38 in 0 : vector<8x128xf32>, vector<8x128xf32>, vector<8x128xf32> -> vector<24x128xf32>
    %cst_15 = arith.constant dense<0.000000e+00> : vector<8x128xf32>
    %40 = tpu.matmul %26, %39, %cst_15 {dimension_numbers = #tpu.dot_dimension_numbers<[1], [0], [0], [1], [0, 0, 1, 1], [], []>} : vector<8x24xf32>, vector<24x128xf32>, vector<8x128xf32> -> vector<8x128xf32>
    %cst_16 = arith.constant dense<0.000000e+00> : vector<8xf32>
    %41 = vector.multi_reduction <add>, %40, %cst_16 [1] : vector<8x128xf32> to vector<8xf32>
    %42 = vector.shape_cast %41 : vector<8xf32> to vector<8x1xf32>
    %cst_17 = arith.constant 6.250000e-02 : f32
    %43 = vector.broadcast %cst_17 : f32 to vector<8x1xf32>
    %44 = arith.mulf %42, %43 : vector<8x1xf32>
    %45 = vector.broadcast %44 : vector<8x1xf32> to vector<8x128xf32>
    %46 = arith.subf %40, %45 : vector<8x128xf32>
    %cst_18 = arith.constant 0.000000e+00 : f32
    %47 = vector.broadcast %cst_18 : f32 to vector<8x128xf32>
    %48 = arith.select %22, %46, %47 : vector<8x128xi1>, vector<8x128xf32>
    %49 = arith.mulf %48, %48 : vector<8x128xf32>
    %cst_19 = arith.constant dense<0.000000e+00> : vector<8xf32>
    %50 = vector.multi_reduction <add>, %49, %cst_19 [1] : vector<8x128xf32> to vector<8xf32>
    %51 = vector.shape_cast %50 : vector<8xf32> to vector<8x1xf32>
    %cst_20 = arith.constant 6.250000e-02 : f32
    %52 = vector.broadcast %cst_20 : f32 to vector<8x1xf32>
    %53 = arith.mulf %51, %52 : vector<8x1xf32>
    %cst_21 = arith.constant 9.99999974E-6 : f32
    %54 = vector.broadcast %cst_21 : f32 to vector<8x1xf32>
    %55 = arith.addf %53, %54 : vector<8x1xf32>
    %56 = math.rsqrt %55 : vector<8x1xf32>
    %57 = arith.mulf %29, %56 : vector<8x1xf32>
    %58 = arith.mulf %44, %57 : vector<8x1xf32>
    %59 = arith.subf %30, %58 : vector<8x1xf32>
    %60 = vector.broadcast %57 : vector<8x1xf32> to vector<8x128xf32>
    %61 = arith.mulf %40, %60 : vector<8x128xf32>
    %62 = vector.broadcast %59 : vector<8x1xf32> to vector<8x128xf32>
    %63 = arith.addf %61, %62 : vector<8x128xf32>
    %cst_22 = arith.constant 0.000000e+00 : f32
    %64 = vector.broadcast %cst_22 : f32 to vector<8x128xf32>
    %65 = arith.maximumf %63, %64 : vector<8x128xf32>
    %cst_23 = arith.constant 0.000000e+00 : f32
    %66 = vector.broadcast %cst_23 : f32 to vector<8x128xf32>
    %67 = arith.select %22, %65, %66 : vector<8x128xi1>, vector<8x128xf32>
    %c1_i32_24 = arith.constant 1 : i32
    %68 = tpu.dynamic_rotate %65 by %c1_i32_24 dim 1 : vector<8x128xf32>, i32 -> vector<8x128xf32>
    %cst_25 = arith.constant 0.000000e+00 : f32
    %69 = vector.broadcast %cst_25 : f32 to vector<8x128xf32>
    %70 = arith.select %23, %68, %69 : vector<8x128xi1>, vector<8x128xf32>
    %c127_i32_26 = arith.constant 127 : i32
    %71 = tpu.dynamic_rotate %65 by %c127_i32_26 dim 1 : vector<8x128xf32>, i32 -> vector<8x128xf32>
    %cst_27 = arith.constant 0.000000e+00 : f32
    %72 = vector.broadcast %cst_27 : f32 to vector<8x128xf32>
    %73 = arith.select %24, %71, %72 : vector<8x128xi1>, vector<8x128xf32>
    %74 = tpu.concatenate %70, %67, %73 in 0 : vector<8x128xf32>, vector<8x128xf32>, vector<8x128xf32> -> vector<24x128xf32>
    %cst_28 = arith.constant dense<0.000000e+00> : vector<8x128xf32>
    %75 = tpu.matmul %27, %74, %cst_28 {dimension_numbers = #tpu.dot_dimension_numbers<[1], [0], [0], [1], [0, 0, 1, 1], [], []>} : vector<8x24xf32>, vector<24x128xf32>, vector<8x128xf32> -> vector<8x128xf32>
    %cst_29 = arith.constant dense<0.000000e+00> : vector<8xf32>
    %76 = vector.multi_reduction <add>, %75, %cst_29 [1] : vector<8x128xf32> to vector<8xf32>
    %77 = vector.shape_cast %76 : vector<8xf32> to vector<8x1xf32>
    %cst_30 = arith.constant 6.250000e-02 : f32
    %78 = vector.broadcast %cst_30 : f32 to vector<8x1xf32>
    %79 = arith.mulf %77, %78 : vector<8x1xf32>
    %80 = vector.broadcast %79 : vector<8x1xf32> to vector<8x128xf32>
    %81 = arith.subf %75, %80 : vector<8x128xf32>
    %cst_31 = arith.constant 0.000000e+00 : f32
    %82 = vector.broadcast %cst_31 : f32 to vector<8x128xf32>
    %83 = arith.select %22, %81, %82 : vector<8x128xi1>, vector<8x128xf32>
    %84 = arith.mulf %83, %83 : vector<8x128xf32>
    %cst_32 = arith.constant dense<0.000000e+00> : vector<8xf32>
    %85 = vector.multi_reduction <add>, %84, %cst_32 [1] : vector<8x128xf32> to vector<8xf32>
    %86 = vector.shape_cast %85 : vector<8xf32> to vector<8x1xf32>
    %cst_33 = arith.constant 6.250000e-02 : f32
    %87 = vector.broadcast %cst_33 : f32 to vector<8x1xf32>
    %88 = arith.mulf %86, %87 : vector<8x1xf32>
    %cst_34 = arith.constant 9.99999974E-6 : f32
    %89 = vector.broadcast %cst_34 : f32 to vector<8x1xf32>
    %90 = arith.addf %88, %89 : vector<8x1xf32>
    %91 = math.rsqrt %90 : vector<8x1xf32>
    %92 = arith.mulf %31, %91 : vector<8x1xf32>
    %93 = arith.mulf %79, %92 : vector<8x1xf32>
    %94 = arith.subf %32, %93 : vector<8x1xf32>
    %95 = vector.broadcast %92 : vector<8x1xf32> to vector<8x128xf32>
    %96 = arith.mulf %75, %95 : vector<8x128xf32>
    %97 = vector.broadcast %94 : vector<8x1xf32> to vector<8x128xf32>
    %98 = arith.addf %96, %97 : vector<8x128xf32>
    %cst_35 = arith.constant dense<0.000000e+00> : vector<8x128xf32>
    %99 = tpu.matmul %28, %25, %cst_35 {dimension_numbers = #tpu.dot_dimension_numbers<[1], [0], [0], [1], [0, 0, 1, 1], [], []>} : vector<8x8xf32>, vector<8x128xf32>, vector<8x128xf32> -> vector<8x128xf32>
    %100 = arith.addf %98, %99 : vector<8x128xf32>
    %cst_36 = arith.constant 0.000000e+00 : f32
    %101 = vector.broadcast %cst_36 : f32 to vector<8x128xf32>
    %102 = arith.maximumf %100, %101 : vector<8x128xf32>
    %c0_37 = arith.constant 0 : index
    %c0_38 = arith.constant 0 : index
    %103 = vector.load %arg2[%c0_37, %c0_38] : memref<8x128xf32, #tpu.memory_space<vmem>>, vector<8x128xf32>
    tpu.vector_store %arg2[%c0_37, %c0_38], %102 {strides = array<i32>} : memref<8x128xf32, #tpu.memory_space<vmem>>, vector<8x128xf32>,
    return
  }
}

</mosaic_0001>

<llo_original>
// kernel: kmax_pool_block.1
$region0: #{kmax_pool_block.1}
  #allocation0 [shape = 'u32[]', space=smem, size = 0x4, offset = 0x4, fixed_abs, tag = 'smem constant byte address 0x4 - core index']
  #allocation1 [shape = 'u32[72,128]{1,0:T(1,128)}', space=vmem, size = 0x9000, scoped, tag = 'internal scratch']
  %s0 = inlined_call_operand.vmem [shape: f32[8,128], index: 0, kind: input, shape index: {}]
  %s1 = inlined_call_operand.vmem [shape: f32[32,24], index: 1, kind: input, shape index: {}]
  %s2 = inlined_call_operand.vmem [shape: f32[8,128], index: 2, kind: output, shape index: {}]
  %s3 = sld [smem:[#allocation0]]
  $region18: #{kmax_pool_block.1} parent=0
    _
  %s5 = ssub.s32 1, %s3
  %s6 = scalar_select 0, %s5, %s3
  // Predicated region
  $region2: #{kmax_pool_block.1} parent=0 // pred_check
    _
  $region3: #{kmax_pool_block.1} parent=0 // pred_check_branch
    %8 = sbr.rel (0) target = $region5
  $region4: #{kmax_pool_block.1} parent=0 // pred_region
    _
  $region5: #{kmax_pool_block.1} parent=0 // pred_fallthru
    _
  // Predicated region
  $region6: #{kmax_pool_block.1} parent=0 // pred_check
    _
  $region7: #{kmax_pool_block.1} parent=0 // pred_check_branch
    %10 = sbr.rel (0) target = $region9
  $region8: #{kmax_pool_block.1} parent=0 // pred_region
    _
  $region9: #{kmax_pool_block.1} parent=0 // pred_fallthru
    _
  %v11 = vlaneseq
  %v12 = vand.u32 %v11, 127
  %vm13 = vcmp.lt.s32.totalorder %v12, 0
  %v14 = vsub.s32 0, %v12
  %v15 = vsel %vm13, %v14, %v12
  %v16 = vshrl.u32 %v15, 3
  %v17 = vand.u32 %v15, 7
  %v18 = vsub.s32 0, %v17
  %v19 = vsel %vm13, %v18, %v17
  %vm20 = vcmp.ne.s32.totalorder %v19, 0
  %vm21 = vcmp.lt.s32.totalorder %v19, 0
  %vm22 = vmand %vm21, %vm20
  %v23 = vadd.s32 %v19, 8
  %v24 = vsel %vm22, %v23, %v19
  %vm25 = vcmp.ge.s32.totalorder %v24, 1
  %vm26 = vcmp.le.s32.totalorder %v24, 6
  %vm27 = vcmp.lt.s32.totalorder %v12, 16
  %vm28 = vmand %vm25, %vm27
  %vm29 = vmand %vm26, %vm27
  %v30 = vld [vmem:[%s0] sm:$0xff]
  %v31 = vld [vmem:[%s1] sm:$0xff]
  %v32 = vld [vmem:[%s1 + $0x8] sm:$0xff]
  %v33 = vld [vmem:[%s1 + $0x10] sm:$0xff]
  %v34 = vld [vmem:[%s1 + $0x18] sm:$0xff]
  %35 = vrot.lane.b32.xlu0 %v30, 1
  %v36 = vpop.permute.xlu0 %35
  %v37 = vsel %vm28, %v36, 0.0
  %38 = vrot.lane.b32.xlu0 %v30, 127
  %v39 = vpop.permute.xlu0 %38
  %v40 = vsel %vm29, %v39, 0.0
  %vm41 = vcmask 195584
  %v43 = vsel %vm41, %v31, 0
  %45 = vmatpush.msra.mxu0 0.0
  %46 = vmatpush.msra.mxu0 0.0
  %47 = vmatpush.msra.mxu0 0.0
  %48 = vmatpush.msra.mxu0 0.0
  %49 = vmatpush.msra.mxu0 0.0
  %50 = vmatpush.msra.mxu0 0.0
  %51 = vmatpush.msra.mxu0 0.0
  %52 = vmatpush.msra.mxu0 0.0
  %53 = vmatpush.msra.mxu0 0.0
  %54 = vmatpush.msra.mxu0 0.0
  %55 = vmatpush.msra.mxu0 0.0
  %56 = vmatpush.msra.mxu0 0.0
  %57 = vmatpush.msra.mxu0 0.0
  %58 = vmatpush.msra.mxu0 %v40
  %59 = vmatpush.msra.mxu0 %v30
  %60 = vmatpush.msra.mxu0 %v37
  %61 = vmatmul.f32.gmra.mxu0 %v43
  %v62 = vpop.f32.mrf.mxu0
  %v63 = vadd.f32 0.0, %v62
  %64 = vdwg.mxu0
  %65 = vadd.xlane.f32.xlu0 %v63
  %v66 = vpop.xlane.xlu0 %65
  %v67 = vmul.f32 %v66, 0.0625
  %v68 = vsub.f32 %v63, %v67
  %v69 = vsel %vm27, %v68, 0.0
  %v70 = vmul.f32 %v69, %v69
  %71 = vadd.xlane.f32.xlu0 %v70
  %v72 = vpop.xlane.xlu0 %71
  %v73 = vmul.f32 %v72, 0.0625
  %v74 = vadd.f32 %v73, 1e-05
  %v75 = vrsqrt.pop %v74
  %v76 = vmul.f32 %v75, %v74
  %v77 = vmul.f32 %v76, %v75
  %v78 = vmul.f32 0.5, %v77
  %v79 = vsub.f32 1.5, %v78
  %v80 = vmul.f32 %v75, %v79
  %vm81 = vweird.f32 %v74
  %vm82 = vweird.f32 %v75
  %vm83 = vmor %vm81, %vm82
  %v84 = vsel %vm83, %v75, %v80
  %v85 = vmul.f32 %v34, %v84
  %v86 = vmul.f32 %v67, %v85
  %88 = vrot.lane.b32.xlu0 %v86, 1
  %v89 = vpop.permute.xlu0 %88
  %v91 = vsub.f32 %v34, %v89
  %93 = vset.pattern.permute.xlu0 0
  %94 = vperm.xlu0 %93, %v85
  %v95 = vpop.permute.xlu0 %94
  %v97 = vmul.f32 %v63, %v95
  %99 = vset.pattern.permute.xlu0 1
  %100 = vperm.xlu0 %99, %v91
  %v101 = vpop.permute.xlu0 %100
  %v103 = vadd.f32 %v97, %v101
  %v104 = vmax.f32 %v103, 0.0
  %v105 = vsel %vm27, %v104, 0.0
  %106 = vrot.lane.b32.xlu0 %v104, 1
  %v107 = vpop.permute.xlu0 %106
  %v108 = vsel %vm28, %v107, 0.0
  %109 = vrot.lane.b32.xlu0 %v104, 127
  %v110 = vpop.permute.xlu0 %109
  %v111 = vsel %vm29, %v110, 0.0
  %v113 = vsel %vm41, %v32, 0
  %115 = vmatpush.msra.mxu0 0.0
  %116 = vmatpush.msra.mxu0 0.0
  %117 = vmatpush.msra.mxu0 0.0
  %118 = vmatpush.msra.mxu0 0.0
  %119 = vmatpush.msra.mxu0 0.0
  %120 = vmatpush.msra.mxu0 0.0
  %121 = vmatpush.msra.mxu0 0.0
  %122 = vmatpush.msra.mxu0 0.0
  %123 = vmatpush.msra.mxu0 0.0
  %124 = vmatpush.msra.mxu0 0.0
  %125 = vmatpush.msra.mxu0 0.0
  %126 = vmatpush.msra.mxu0 0.0
  %127 = vmatpush.msra.mxu0 0.0
  %128 = vmatpush.msra.mxu0 %v111
  %129 = vmatpush.msra.mxu0 %v105
  %130 = vmatpush.msra.mxu0 %v108
  %131 = vmatmul.f32.gmra.mxu0 %v113
  %v132 = vpop.f32.mrf.mxu0
  %v133 = vadd.f32 0.0, %v132
  %134 = vdwg.mxu0
  %135 = vadd.xlane.f32.xlu0 %v133
  %v136 = vpop.xlane.xlu0 %135
  %v137 = vmul.f32 %v136, 0.0625
  %v138 = vsub.f32 %v133, %v137
  %v139 = vsel %vm27, %v138, 0.0
  %v140 = vmul.f32 %v139, %v139
  %141 = vadd.xlane.f32.xlu0 %v140
  %v142 = vpop.xlane.xlu0 %141
  %v143 = vmul.f32 %v142, 0.0625
  %v144 = vadd.f32 %v143, 1e-05
  %v145 = vrsqrt.pop %v144
  %v146 = vmul.f32 %v145, %v144
  %v147 = vmul.f32 %v146, %v145
  %v148 = vmul.f32 0.5, %v147
  %v149 = vsub.f32 1.5, %v148
  %v150 = vmul.f32 %v145, %v149
  %vm151 = vweird.f32 %v144
  %vm152 = vweird.f32 %v145
  %vm153 = vmor %vm151, %vm152
  %v154 = vsel %vm153, %v145, %v150
  %v155 = vmul.f32 %v34, %v154
  %v156 = vmul.f32 %v137, %v155
  %158 = vrot.lane.b32.xlu0 %v156, 1
  %v159 = vpop.permute.xlu0 %158
  %v161 = vsub.f32 %v34, %v159
  %163 = vset.pattern.permute.xlu0 2
  %164 = vperm.xlu0 %163, %v155
  %v165 = vpop.permute.xlu0 %164
  %v167 = vmul.f32 %v133, %v165
  %169 = vset.pattern.permute.xlu0 3
  %170 = vperm.xlu0 %169, %v161
  %v171 = vpop.permute.xlu0 %170
  %v173 = vadd.f32 %v167, %v171
  %vm174 = vcmask 64512
  %v176 = vsel %vm174, %v33, 0
  %178 = vmatpush.msra.mxu0 0.0
  %179 = vmatpush.msra.mxu0 0.0
  %180 = vmatpush.msra.mxu0 0.0
  %181 = vmatpush.msra.mxu0 0.0
  %182 = vmatpush.msra.mxu0 0.0
  %183 = vmatpush.msra.mxu0 0.0
  %184 = vmatpush.msra.mxu0 0.0
  %185 = vmatpush.msra.mxu0 0.0
  %186 = vmatpush.msra.mxu0 0.0
  %187 = vmatpush.msra.mxu0 0.0
  %188 = vmatpush.msra.mxu0 0.0
  %189 = vmatpush.msra.mxu0 0.0
  %190 = vmatpush.msra.mxu0 0.0
  %191 = vmatpush.msra.mxu0 0.0
  %192 = vmatpush.msra.mxu0 0.0
  %193 = vmatpush.msra.mxu0 %v30
  %194 = vmatmul.f32.gmra.mxu0 %v176
  %v195 = vpop.f32.mrf.mxu0
  %v196 = vadd.f32 0.0, %v195
  %197 = vdwg.mxu0
  %v198 = vadd.f32 %v173, %v196
  %v199 = vmax.f32 %v198, 0.0
  %200 = vst [vmem:[%s2] sm:$0xff] %v199
  // Predicated region
  $region10: #{kmax_pool_block.1} parent=0 // pred_check
    _
  $region11: #{kmax_pool_block.1} parent=0 // pred_check_branch
    %202 = sbr.rel (0) target = $region13
  $region12: #{kmax_pool_block.1} parent=0 // pred_region
    _
  $region13: #{kmax_pool_block.1} parent=0 // pred_fallthru
    _
  // Predicated region
  $region14: #{kmax_pool_block.1} parent=0 // pred_check
    _
  $region15: #{kmax_pool_block.1} parent=0 // pred_check_branch
    %204 = sbr.rel (0) target = $region17
  $region16: #{kmax_pool_block.1} parent=0 // pred_region
    _
  $region17: #{kmax_pool_block.1} parent=0 // pred_fallthru
    _

</llo_original>
